<compile_context>
chip_gen: v7x
topology: tpu7x:2x2x1
jax: 0.10.0
libtpu: 0.0.40
codegen_flags: <defaults>
</compile_context>

<pallas_src>
import functools
import math

import jax
import jax.numpy as jnp
from jax import lax
from jax.experimental import pallas as pl
from jax.experimental.pallas import tpu as pltpu

LN_EPS = 1e-5


def _cdiv(a, b):
    return -(-a // b)


def _round_up(x, m):
    return ((x + m - 1) // m) * m


def _tpu_is_v7():
    try:
        return "v7" in jax.devices()[0].device_kind.lower()
    except Exception:
        return False


def _tiled_bytes(shape, itemsize):
    """VMEM footprint of a block: last two dims padded to the (8, 128) tile."""
    shape = tuple(shape)
    if len(shape) == 1:
        shape = (1,) + shape
    *lead, sub, lane = shape
    n = 1
    for d in lead:
        n *= d
    return n * _round_up(sub, 8) * _round_up(lane, 128) * itemsize


# ----------------------------- Pallas kernel -----------------------------

def _make_spt_kernel(p, patch_dim):
    """Finish the (h p1)(w p2)->(hw)(p1 p2 c) gather, LayerNorm, Linear."""

    def kernel(x_ref, w_ref, b_ref, o_ref):
        # x_ref: (tile_r, p, Wp, p*5D) -- a tile of patch-rows; within the last
        # axis the feature order is (p2, shift, d).
        rows = o_ref.shape[0]                               # tile_r * Wp tokens
        xb = x_ref[...]
        # Lane-concat over p1 yields the (p1, p2, shift, d) feature order of the
        # PyTorch Rearrange, i.e. exactly the row order of the (folded) weight.
        chunks = [xb[:, q, :, :] for q in range(p)]         # each (tile_r, Wp, p*5D)
        tok = jnp.concatenate(chunks, axis=-1) if p > 1 else chunks[0]
        tok = tok.reshape(rows, patch_dim).astype(jnp.float32)

        # LayerNorm statistics, two-pass (centered) in f32 -- robust to large means.
        mean = jnp.mean(tok, axis=-1, keepdims=True)
        xc = tok - mean
        var = jnp.mean(xc * xc, axis=-1, keepdims=True)
        xn = xc * lax.rsqrt(var + LN_EPS)

        # LN affine is folded into w/b outside the kernel; single MXU matmul.
        out = jnp.dot(xn.astype(w_ref.dtype), w_ref[...],
                      preferred_element_type=jnp.float32)
        out = out + b_ref[...].astype(jnp.float32)
        o_ref[...] = out.astype(o_ref.dtype)

    return kernel


def spt_merge_pallas(x5r, w_folded, b_folded, *, p, Wp, patch_dim, dim, out_dtype):
    """x5r: (R, p, Wp, p*5D) token source  ->  (R*Wp, dim) tokens."""
    R = x5r.shape[0]
    pC5 = x5r.shape[3]
    tok_isz = jnp.dtype(x5r.dtype).itemsize
    w_isz = jnp.dtype(w_folded.dtype).itemsize
    out_isz = jnp.dtype(out_dtype).itemsize

    is_v7 = _tpu_is_v7()

    # --- tile sizing (generation aware) ---------------------------------
    # Target VMEM-padded token bytes per block: ~2 MiB on v7x (64 MiB VMEM,
    # 2 TensorCores), ~4 MiB on v5e/v6e (128 MiB VMEM).
    target = (2 << 20) if is_v7 else (4 << 20)
    row_bytes = _tiled_bytes((p, Wp, pC5), tok_isz)          # one patch-row, padded
    tile_r = max(1, target // max(row_bytes, 1))
    # Keep >= 8 grid steps (>= 4 per TensorCore under megacore) for pipelining.
    tile_r = min(tile_r, max(1, _cdiv(R, 8)))
    # The output block's second-minor dim (tile_r*Wp) must be a multiple of the
    # sublane tile for the output dtype (its last dim is full-extent already).
    sub_mult = {4: 8, 2: 16, 1: 32}.get(out_isz, 8)
    g = sub_mult // math.gcd(Wp, sub_mult)
    tile_r = max(g, (tile_r // g) * g)
    grid = _cdiv(R, tile_r)
    rows = tile_r * Wp

    # --- VMEM budget ------------------------------------------------------
    est = (2 * tile_r * row_bytes                             # double-buffered input
           + 2 * _tiled_bytes((patch_dim, dim), w_isz)        # resident weight (2 bufs)
           + 2 * _tiled_bytes((rows, dim), out_isz)           # double-buffered output
           + 4 * rows * _round_up(patch_dim, 128) * 4         # f32 LN temporaries
           + (4 << 20))                                       # headroom
    cap = (48 << 20) if is_v7 else (100 << 20)
    vmem_limit = int(min(cap, max(32 << 20, est)))

    kernel = _make_spt_kernel(p, patch_dim)
    out = pl.pallas_call(
        kernel,
        out_shape=jax.ShapeDtypeStruct((R * Wp, dim), out_dtype),
        grid_spec=pltpu.PrefetchScalarGridSpec(
            num_scalar_prefetch=0,
            grid=(grid,),
            in_specs=[
                # Token source: last three dims are full-extent (legal block dims
                # regardless of 8/128 divisibility); contiguous HBM reads.
                pl.BlockSpec((tile_r, p, Wp, pC5), lambda i: (i, 0, 0, 0)),
                # Constant block index -> weight / bias fetched once, kept resident.
                pl.BlockSpec((patch_dim, dim), lambda i: (0, 0)),
                pl.BlockSpec((1, dim), lambda i: (0, 0)),
            ],
            # Output written at its natural width (full-extent last dim): no pad
            # and no de-pad slice pass over the output.
            out_specs=pl.BlockSpec((rows, dim), lambda i: (i, 0)),
        ),
        compiler_params=pltpu.CompilerParams(
            dimension_semantics=("parallel",),
            vmem_limit_bytes=vmem_limit,
        ),
    )(x5r, w_folded, b_folded)
    return out


# ------------------- JAX glue (shift + zero-copy regroup) -------------------

def patch_shift_token_source(x, H, W, p, token_dtype):
    """x: (B, H*W, D) -> (B*H//p, p1, W//p, p2*5*D) in `token_dtype`.

    The 5 shifted views are stacked channels-last (one 5x write, in bf16 by
    default) and the result is *reshaped* -- contiguously, no transpose/copy --
    into the layout the kernel consumes.  The remaining p1<->w gather happens
    inside the kernel in VMEM.
    """
    B, N, D = x.shape
    assert N == H * W
    s = p // 2
    s2 = 2 * s
    xi = x.astype(token_dtype).reshape(B, H, W, D)                        # NHWC, no transpose
    xp = jnp.pad(xi, ((0, 0), (s, s), (s, s), (0, 0)))
    views = (
        xi,                                  # center
        xp[:, :H, :W, :],                    # left-up
        xp[:, :H, s2:s2 + W, :],             # right-up
        xp[:, s2:s2 + H, :W, :],             # left-bottom
        xp[:, s2:s2 + H, s2:s2 + W, :],      # right-bottom
    )
    x5 = jnp.stack(views, axis=3)            # (B, H, W, 5, D): single 5x HBM write
    # Contiguous regroup (no data movement): (B, Hp, p1, Wp, p2, 5, D)
    #   -> (B*Hp, p1, Wp, p2*5*D)
    return x5.reshape(B * (H // p), p, W // p, p * 5 * D)


def shifted_patch_tokenization(x, params, H, W, merging_size, *,
                               token_dtype=jnp.bfloat16,
                               matmul_dtype=jnp.bfloat16,
                               out_dtype=None):
    """Full forward (exist_class_t=False, is_pe=False). x: (B, H*W, in_dim)."""
    B, N, D = x.shape
    p = merging_size
    assert p >= 2 and H % p == 0 and W % p == 0 and N == H * W
    Hp, Wp = H // p, W // p
    patch_dim = D * 5 * p * p
    dim = params["w"].shape[1]
    out_dtype = x.dtype if out_dtype is None else out_dtype

    # Fold the LayerNorm affine into the Linear:
    #   (xn*g + be) @ w + b  ==  xn @ (g[:,None]*w) + (b + be @ w)
    w32 = params["w"].astype(jnp.float32)
    w_folded = (params["ln_gamma"].astype(jnp.float32)[:, None] * w32).astype(matmul_dtype)
    b_folded = (params["b"].astype(jnp.float32)
                + params["ln_beta"].astype(jnp.float32) @ w32).reshape(1, dim)

    x5r = patch_shift_token_source(x, H, W, p, token_dtype)
    out = spt_merge_pallas(x5r, w_folded, b_folded, p=p, Wp=Wp,
                           patch_dim=patch_dim, dim=dim, out_dtype=out_dtype)
    return out.reshape(B, Hp * Wp, dim)


# ----------------- reference (plain JAX, mirrors PyTorch) -----------------

def reference_forward(x, params, H, W, p):
    B, N, D = x.shape
    shift = p // 2
    s2 = 2 * shift
    x_img = x.reshape(B, H, W, D).transpose(0, 3, 1, 2)                  # NCHW
    x_pad = jnp.pad(x_img, ((0, 0), (0, 0), (shift, shift), (shift, shift)))
    x_lu = x_pad[:, :, :H, :W]
    x_ru = x_pad[:, :, :H, s2:s2 + W]
    x_lb = x_pad[:, :, s2:s2 + H, :W]
    x_rb = x_pad[:, :, s2:s2 + H, s2:s2 + W]
    x_cat = jnp.concatenate([x_img, x_lu, x_ru, x_lb, x_rb], axis=1)     # (B, 5D, H, W)
    C = 5 * D
    xr = x_cat.reshape(B, C, H // p, p, W // p, p).transpose(0, 2, 4, 3, 5, 1)
    tokens = xr.reshape(B, (H // p) * (W // p), p * p * C)
    mean = jnp.mean(tokens, axis=-1, keepdims=True)
    var = jnp.mean((tokens - mean) ** 2, axis=-1, keepdims=True)
    y = (tokens - mean) / jnp.sqrt(var + LN_EPS)
    y = y * params["ln_gamma"] + params["ln_beta"]
    return jnp.dot(y, params["w"]) + params["b"]


# ----------------------------- main -----------------------------

if __name__ == "__main__":
    # Small config consistent with the module: in_dim=4, dim=32, merging_size=2.
    B, H, W, in_dim, dim, merging_size = 2, 16, 16, 4, 32, 2
    patch_dim = in_dim * 5 * merging_size ** 2                            # 80
    n_patch = (H // merging_size) * (W // merging_size)                   # 64

    key = jax.random.PRNGKey(0)
    kx, kw, kb, kg, kbe = jax.random.split(key, 5)

    x = jax.random.normal(kx, (B, H * W, in_dim), dtype=jnp.float32)      # (2, 256, 4)
    w = jax.random.normal(kw, (patch_dim, dim), jnp.float32) / patch_dim ** 0.5
    b = 0.01 * jax.random.normal(kb, (dim,), jnp.float32)
    params_affine = {
        "ln_gamma": 1.0 + 0.1 * jax.random.normal(kg, (patch_dim,), jnp.float32),
        "ln_beta": 0.1 * jax.random.normal(kbe, (patch_dim,), jnp.float32),
        "w": w, "b": b,
    }
    params_id = dict(params_affine,
                     ln_gamma=jnp.ones((patch_dim,), jnp.float32),
                     ln_beta=jnp.zeros((patch_dim,), jnp.float32))

    fwd_strict = jax.jit(functools.partial(
        shifted_patch_tokenization, H=H, W=W, merging_size=merging_size,
        token_dtype=jnp.float32, matmul_dtype=jnp.float32))
    fwd_fast = jax.jit(functools.partial(                                 # bf16 defaults
        shifted_patch_tokenization, H=H, W=W, merging_size=merging_size))

    # Check A: trivial LN affine, f32 tokens + f32 MXU operands (strict).
    ref_id = reference_forward(x, params_id, H, W, merging_size)
    out_a = jax.block_until_ready(fwd_strict(x, params_id))
    assert out_a.shape == (B, n_patch, dim)
    assert jnp.allclose(out_a, ref_id, atol=1e-3, rtol=1e-3), "f32/identity-affine mismatch"

    # Check B: non-trivial LN affine (exercises the folded w'/b'), f32 path.
    # Tolerance covers the XLA-vs-Mosaic matmul-precision difference on the
    # algebraically refactored (folded) operands, not a semantic mismatch.
    ref_aff = reference_forward(x, params_affine, H, W, merging_size)
    out_b = jax.block_until_ready(fwd_strict(x, params_affine))
    assert out_b.shape == (B, n_patch, dim)
    assert jnp.allclose(out_b, ref_aff, atol=2e-2, rtol=2e-2), "f32/folded-affine mismatch"

    # Check C: default fast path -- bf16 token storage + bf16 MXU operands,
    # LN statistics still f32 inside the kernel.
    out_c = jax.block_until_ready(fwd_fast(x, params_affine))
    assert out_c.shape == (B, n_patch, dim)
    assert jnp.allclose(out_c, ref_aff, atol=1e-1, rtol=1e-1), "bf16 path mismatch"

    print("KERNEL_OK")
</pallas_src>

<mosaic_0001>
module attributes {stable_mosaic.version = 11 : i64} {
  func.func @kernel(%arg0: i32, %arg1: memref<2x2x8x40xf32, #tpu.memory_space<vmem>>, %arg2: memref<80x32xf32, #tpu.memory_space<vmem>>, %arg3: memref<1x32xf32, #tpu.memory_space<vmem>>, %arg4: memref<16x32xf32, #tpu.memory_space<vmem>>) attributes {dimension_semantics = [#tpu.dimension_semantics<parallel>], iteration_bounds = array<i64: 8>, scalar_prefetch = 0 : i64, scratch_operands = 0 : i64, tpu.core_type = #tpu.core_type<tc>, window_params = [{transform_indices = @transform_0, window_bounds = array<i64: 2, 2, 8, 40>}, {pipeline_mode = #tpu.pipeline_mode<synchronous>, transform_indices = @transform_1, window_bounds = array<i64: 80, 32>}, {pipeline_mode = #tpu.pipeline_mode<synchronous>, transform_indices = @transform_2, window_bounds = array<i64: 1, 32>}, {transform_indices = @transform_3, window_bounds = array<i64: 16, 32>}]} {
    %c0 = arith.constant 0 : index
    %c0_0 = arith.constant 0 : index
    %c0_1 = arith.constant 0 : index
    %c0_2 = arith.constant 0 : index
    %0 = vector.load %arg1[%c0, %c0_0, %c0_1, %c0_2] : memref<2x2x8x40xf32, #tpu.memory_space<vmem>>, vector<2x2x8x40xf32>
    %1 = vector.extract_strided_slice %0 {offsets = [0, 0, 0, 0], sizes = [2, 1, 8, 40], strides = [1, 1, 1, 1]} : vector<2x2x8x40xf32> to vector<2x1x8x40xf32>
    %2 = vector.shape_cast %1 : vector<2x1x8x40xf32> to vector<2x8x40xf32>
    %3 = vector.extract_strided_slice %0 {offsets = [0, 1, 0, 0], sizes = [2, 1, 8, 40], strides = [1, 1, 1, 1]} : vector<2x2x8x40xf32> to vector<2x1x8x40xf32>
    %4 = vector.shape_cast %3 : vector<2x1x8x40xf32> to vector<2x8x40xf32>
    %5 = tpu.concatenate %2, %4 in 2 : vector<2x8x40xf32>, vector<2x8x40xf32> -> vector<2x8x80xf32>
    %6 = vector.shape_cast %5 : vector<2x8x80xf32> to vector<16x80xf32>
    %cst = arith.constant dense<0.000000e+00> : vector<16xf32>
    %7 = vector.multi_reduction <add>, %6, %cst [1] : vector<16x80xf32> to vector<16xf32>
    %8 = vector.shape_cast %7 : vector<16xf32> to vector<16x1xf32>
    %cst_3 = arith.constant 8.000000e+01 : f32
    %9 = vector.broadcast %cst_3 : f32 to vector<16x1xf32>
    %10 = arith.divf %8, %9 : vector<16x1xf32>
    %11 = vector.broadcast %10 : vector<16x1xf32> to vector<16x80xf32>
    %12 = arith.subf %6, %11 : vector<16x80xf32>
    %13 = arith.mulf %12, %12 : vector<16x80xf32>
    %cst_4 = arith.constant dense<0.000000e+00> : vector<16xf32>
    %14 = vector.multi_reduction <add>, %13, %cst_4 [1] : vector<16x80xf32> to vector<16xf32>
    %15 = vector.shape_cast %14 : vector<16xf32> to vector<16x1xf32>
    %cst_5 = arith.constant 8.000000e+01 : f32
    %16 = vector.broadcast %cst_5 : f32 to vector<16x1xf32>
    %17 = arith.divf %15, %16 : vector<16x1xf32>
    %cst_6 = arith.constant 9.99999974E-6 : f32
    %18 = vector.broadcast %cst_6 : f32 to vector<16x1xf32>
    %19 = arith.addf %17, %18 : vector<16x1xf32>
    %20 = math.rsqrt %19 : vector<16x1xf32>
    %21 = vector.broadcast %20 : vector<16x1xf32> to vector<16x80xf32>
    %22 = arith.mulf %12, %21 : vector<16x80xf32>
    %c0_7 = arith.constant 0 : index
    %c0_8 = arith.constant 0 : index
    %23 = vector.load %arg2[%c0_7, %c0_8] : memref<80x32xf32, #tpu.memory_space<vmem>>, vector<80x32xf32>
    %cst_9 = arith.constant dense<0.000000e+00> : vector<16x32xf32>
    %24 = tpu.matmul %22, %23, %cst_9 {dimension_numbers = #tpu.dot_dimension_numbers<[1], [0], [0], [1], [0, 0, 1, 1], [], []>} : vector<16x80xf32>, vector<80x32xf32>, vector<16x32xf32> -> vector<16x32xf32>
    %c0_10 = arith.constant 0 : index
    %c0_11 = arith.constant 0 : index
    %25 = vector.load %arg3[%c0_10, %c0_11] : memref<1x32xf32, #tpu.memory_space<vmem>>, vector<1x32xf32>
    %26 = vector.broadcast %25 : vector<1x32xf32> to vector<16x32xf32>
    %27 = arith.addf %24, %26 : vector<16x32xf32>
    %c0_12 = arith.constant 0 : index
    %c0_13 = arith.constant 0 : index
    %28 = vector.load %arg4[%c0_12, %c0_13] : memref<16x32xf32, #tpu.memory_space<vmem>>, vector<16x32xf32>
    tpu.vector_store %arg4[%c0_12, %c0_13], %27 {strides = array<i32>} : memref<16x32xf32, #tpu.memory_space<vmem>>, vector<16x32xf32>,
    return
  }
  func.func @transform_0(%arg0: i32) -> (i32, i32, i32, i32) {
    %c0_i32 = arith.constant 0 : i32
    %c0_i32_0 = arith.constant 0 : i32
    %c0_i32_1 = arith.constant 0 : i32
    %c0_i32_2 = arith.constant 0 : i32
    return %arg0, %c0_i32, %c0_i32_0, %c0_i32_1 : i32, i32, i32, i32
  }
  func.func @transform_1(%arg0: i32) -> (i32, i32) {
    %c0_i32 = arith.constant 0 : i32
    %c0_i32_0 = arith.constant 0 : i32
    %c0_i32_1 = arith.constant 0 : i32
    return %c0_i32, %c0_i32_0 : i32, i32
  }
  func.func @transform_2(%arg0: i32) -> (i32, i32) {
    %c0_i32 = arith.constant 0 : i32
    %c0_i32_0 = arith.constant 0 : i32
    %c0_i32_1 = arith.constant 0 : i32
    return %c0_i32, %c0_i32_0 : i32, i32
  }
  func.func @transform_3(%arg0: i32) -> (i32, i32) {
    %c0_i32 = arith.constant 0 : i32
    %c0_i32_0 = arith.constant 0 : i32
    return %arg0, %c0_i32 : i32, i32
  }
}

</mosaic_0001>

<llo_original>
// kernel: shifted_patch_tokenization.1
$region0: #{shifted_patch_tokenization.1}
  #allocation0 [shape = 'u32[]', space=smem, size = 0x4, offset = 0x4, fixed_abs, tag = 'smem constant byte address 0x4 - core index']
  #allocation1 [shape = 'u32[144,128]{1,0:T(1,128)}', space=vmem, size = 0x12000, scoped, tag = 'internal scratch']
  %s0 = inlined_call_operand.vmem [shape: f32[16,2,8,40], index: 0, kind: input, shape index: {}]
  %s1 = inlined_call_operand.vmem [shape: f32[80,32], index: 1, kind: input, shape index: {}]
  %s2 = inlined_call_operand.vmem [shape: f32[1,32], index: 2, kind: input, shape index: {}]
  %s3 = inlined_call_operand.vmem [shape: f32[128,32], index: 3, kind: output, shape index: {}]
  %s4 = sld [smem:[#allocation0]]
  $region45: #{shifted_patch_tokenization.1} parent=0
    _
  %s6 = ssub.s32 1, %s4
  %s7 = scalar_select 0, %s6, %s4
  loop: start=0, step=1, limit=10
  $region2: #{shifted_patch_tokenization.1} parent=0 // loop_pre_header
    _
  $region3: #{shifted_patch_tokenization.1} parent=0 // loop_header
    %s9 = sphi 0, %s13
    %p10 = scmp.ge.s32.totalorder %s9, 10
    %s19 = sphi 0, %s21
    %s22 = sphi 0, %s19
    %s23 = sphi 0, %s22
    %s39 = sphi 0, %s23
    %s43 = sphi 0, %s43
    %s45 = sphi 0, %s43
    %s46 = sphi 0, %s45
    %s60 = sphi 0, %s46
    %s64 = sphi 0, %s64
    %s66 = sphi 0, %s64
    %s67 = sphi 0, %s66
    %s81 = sphi 0, %s67
    %s87 = sphi 0, %s89
    %s90 = sphi 0, %s87
    %s91 = sphi 0, %s90
    %s107 = sphi 0, %s91
  $region4: #{shifted_patch_tokenization.1} parent=0 // loop_header_branch
    %12 = sbr.rel (%p10) target = $region8
  $region5: #{shifted_patch_tokenization.1} parent=0 // loop_body
    %s14 = ssub.s32 %s9, 1
    %s15 = ssub.s32 %s9, 2
    %s16 = sadd.s32 %s9, 1
    %s17 = ssub.s32 %s9, %s16
    %p18 = scmp.eq.s32.totalorder %s17, 0
    %s20 = sadd.s32 %s19, 1
    %s21 = scalar_select %p18, %s19, %s20
    %p24 = pneg %p18
    %p25 = scmp.eq.s32.totalorder %s9, 7
    %p26 = por %p24, %p25
    %p27 = scmp.ne.s32.totalorder %s19, %s22
    %p28 = scmp.eq.s32.totalorder %s9, 0
    %p29 = por %p27, %p28
    %p30 = scmp.ne.s32.totalorder %s19, %s22
    %p31 = scmp.eq.s32.totalorder %s14, 7
    %p32 = por %p30, %p31
    %p33 = scmp.ne.s32.totalorder %s22, %s23
    %p34 = scmp.eq.s32.totalorder %s14, 0
    %p35 = por %p33, %p34
    %p36 = scmp.ne.s32.totalorder %s22, %s23
    %p37 = scmp.eq.s32.totalorder %s15, 7
    %p38 = por %p36, %p37
    %p40 = scmp.ne.s32.totalorder %s23, %s39
    %p41 = scmp.eq.s32.totalorder %s15, 0
    %p42 = por %p40, %p41
    %s44 = sadd.s32 %s43, 1
    %p47 = scmp.eq.s32.totalorder %s9, 7
    %p48 = scmp.ne.s32.totalorder %s43, %s45
    %p49 = scmp.eq.s32.totalorder %s9, 0
    %p50 = por %p48, %p49
    %p51 = scmp.ne.s32.totalorder %s43, %s45
    %p52 = scmp.eq.s32.totalorder %s14, 7
    %p53 = por %p51, %p52
    %p54 = scmp.ne.s32.totalorder %s45, %s46
    %p55 = scmp.eq.s32.totalorder %s14, 0
    %p56 = por %p54, %p55
    %p57 = scmp.ne.s32.totalorder %s45, %s46
    %p58 = scmp.eq.s32.totalorder %s15, 7
    %p59 = por %p57, %p58
    %p61 = scmp.ne.s32.totalorder %s46, %s60
    %p62 = scmp.eq.s32.totalorder %s15, 0
    %p63 = por %p61, %p62
    %s65 = sadd.s32 %s64, 1
    %p68 = scmp.eq.s32.totalorder %s9, 7
    %p69 = scmp.ne.s32.totalorder %s64, %s66
    %p70 = scmp.eq.s32.totalorder %s9, 0
    %p71 = por %p69, %p70
    %p72 = scmp.ne.s32.totalorder %s64, %s66
    %p73 = scmp.eq.s32.totalorder %s14, 7
    %p74 = por %p72, %p73
    %p75 = scmp.ne.s32.totalorder %s66, %s67
    %p76 = scmp.eq.s32.totalorder %s14, 0
    %p77 = por %p75, %p76
    %p78 = scmp.ne.s32.totalorder %s66, %s67
    %p79 = scmp.eq.s32.totalorder %s15, 7
    %p80 = por %p78, %p79
    %p82 = scmp.ne.s32.totalorder %s67, %s81
    %p83 = scmp.eq.s32.totalorder %s15, 0
    %p84 = por %p82, %p83
    %s85 = ssub.s32 %s9, %s16
    %p86 = scmp.eq.s32.totalorder %s85, 0
    %s88 = sadd.s32 %s87, 1
    %s89 = scalar_select %p86, %s87, %s88
    %p92 = pneg %p86
    %p93 = scmp.eq.s32.totalorder %s9, 7
    %p94 = por %p92, %p93
    %p95 = scmp.ne.s32.totalorder %s87, %s90
    %p96 = scmp.eq.s32.totalorder %s9, 0
    %p97 = por %p95, %p96
    %p98 = scmp.ne.s32.totalorder %s87, %s90
    %p99 = scmp.eq.s32.totalorder %s14, 7
    %p100 = por %p98, %p99
    %p101 = scmp.ne.s32.totalorder %s90, %s91
    %p102 = scmp.eq.s32.totalorder %s14, 0
    %p103 = por %p101, %p102
    %p104 = scmp.ne.s32.totalorder %s90, %s91
    %p105 = scmp.eq.s32.totalorder %s15, 7
    %p106 = por %p104, %p105
    %p108 = scmp.ne.s32.totalorder %s91, %s107
    %p109 = scmp.eq.s32.totalorder %s15, 0
    %p110 = por %p108, %p109
    %p111 = scmp.le.s32.totalorder 1, %s9
    %p112 = scmp.lt.s32.totalorder %s9, 9
    %p113 = pnand %p111, %p112
    %p114 = pneg %p113
    // Predicated region
    $region9: #{shifted_patch_tokenization.1} parent=5 // pred_check
      _
    $region10: #{shifted_patch_tokenization.1} parent=5 // pred_check_branch
      %116 = sbr.rel (%p113) target = $region12
    $region11: #{shifted_patch_tokenization.1} parent=5 // pred_region
      %s117 = ssub.s32 %s9, 1
      // Predicated region
      $region13: #{shifted_patch_tokenization.1} parent=11 // pred_check
        %p118 = pneg %p56
      $region14: #{shifted_patch_tokenization.1} parent=11 // pred_check_branch
        %120 = sbr.rel (%p118) target = $region16
      $region15: #{shifted_patch_tokenization.1} parent=11 // pred_region
        _
      $region16: #{shifted_patch_tokenization.1} parent=11 // pred_fallthru
        _
      // Predicated region
      $region17: #{shifted_patch_tokenization.1} parent=11 // pred_check
        %p121 = pneg %p77
      $region18: #{shifted_patch_tokenization.1} parent=11 // pred_check_branch
        %123 = sbr.rel (%p121) target = $region20
      $region19: #{shifted_patch_tokenization.1} parent=11 // pred_region
        _
      $region20: #{shifted_patch_tokenization.1} parent=11 // pred_fallthru
        _
    $region12: #{shifted_patch_tokenization.1} parent=5 // pred_fallthru
      _
    %p124 = scmp.lt.s32.totalorder %s9, 8
    // Predicated region
    $region21: #{shifted_patch_tokenization.1} parent=5 // pred_check
      %p125 = pneg %p124
    $region22: #{shifted_patch_tokenization.1} parent=5 // pred_check_branch
      %127 = sbr.rel (%p125) target = $region24
    $region23: #{shifted_patch_tokenization.1} parent=5 // pred_region
      // Predicated region
      $region25: #{shifted_patch_tokenization.1} parent=23 // pred_check
        %p128 = pneg %p29
      $region26: #{shifted_patch_tokenization.1} parent=23 // pred_check_branch
        %130 = sbr.rel (%p128) target = $region28
      $region27: #{shifted_patch_tokenization.1} parent=23 // pred_region
        %s131 = smul.u32 2, %s9
        %p132 = scmp.lt.s32.totalorder %s131, 15
        %s133 = scalar_select %p132, %s131, 15
        %s134 = smul.addr %s133, 2
        %s135 = smul.addr %s134, 8
        %s136 = scalar_lea.vmem %s0, %s135
        %s137 = smul.u32 2, %s9
      $region28: #{shifted_patch_tokenization.1} parent=23 // pred_fallthru
        _
    $region24: #{shifted_patch_tokenization.1} parent=5 // pred_fallthru
      _
    %p138 = scmp.le.s32.totalorder 1, %s9
    %p139 = scmp.lt.s32.totalorder %s9, 9
    %p140 = pnand %p138, %p139
    %p141 = pneg %p140
    // Predicated region
    $region29: #{shifted_patch_tokenization.1} parent=5 // pred_check
      _
    $region30: #{shifted_patch_tokenization.1} parent=5 // pred_check_branch
      %143 = sbr.rel (%p140) target = $region32
    $region31: #{shifted_patch_tokenization.1} parent=5 // pred_region
      %s144 = ssub.s32 %s9, 1
      %s145 = smul.u32 2, %s14
      %p146 = scmp.lt.s32.totalorder %s145, 15
      %s147 = scalar_select %p146, %s145, 15
      %s148 = smul.addr %s147, 2
      %s149 = smul.addr %s148, 8
      %s150 = scalar_lea.vmem %s0, %s149
      %p151 = pneg %p35
      %p152 = pneg %p32
      %p153 = pneg %p56
      %p154 = pneg %p53
      %p155 = pneg %p77
      %p156 = pneg %p74
      %p157 = pneg %p103
      %p158 = pneg %p100
      %s159 = smul.u32 2, %s14
      %p160 = scmp.lt.s32.totalorder %s159, 15
      %s161 = scalar_select %p160, %s159, 15
      %s162 = smul.addr %s161, 8
      %s163 = scalar_lea.vmem %s3, %s162
      %s164 = smul.u32 2, %s14
      %p165 = scmp.lt.s32.totalorder %s164, 15
      %s166 = scalar_select %p165, %s164, 15
      %s167 = smul.addr %s166, 2
      %s168 = smul.addr %s167, 8
      %s169 = scalar_lea.vmem %s0, %s168
      %s170 = smul.u32 2, %s14
      %s171 = smul.u32 2, %s14
      %p172 = scmp.lt.s32.totalorder %s171, 15
      %s173 = scalar_select %p172, %s171, 15
      %s174 = smul.addr %s173, 8
      %s175 = scalar_lea.vmem %s3, %s174
      %s176 = smul.u32 2, %s14
      %v177 = vld [vmem:[%s169] sm:$0xff]
      %v178 = vld [vmem:[%s169 + $0x8] sm:$0xff]
      %v179 = vld [vmem:[%s169 + $0x10] sm:$0xff]
      %v180 = vld [vmem:[%s169 + $0x18] sm:$0xff]
      %183 = vrot.lane.b32.xlu0 %v178, 40
      %v184 = vpop.permute.xlu0 %183
      %185 = vrot.lane.b32.xlu0 %v180, 40
      %v186 = vpop.permute.xlu0 %185
      %vm189 = vcmask 326656
      %v190 = vsel %vm189, %v177, %v184
      %v191 = vsel %vm189, %v179, %v186
      %vm192 = vcmask 654336
      %v193 = vsel %vm192, %v190, 0.0
      %194 = vadd.xlane.f32.xlu0 %v193
      %v195 = vpop.xlane.xlu0 %194
      %v196 = vsel %vm192, %v191, 0.0
      %197 = vadd.xlane.f32.xlu0 %v196
      %v198 = vpop.xlane.xlu0 %197
      %v199 = vrcp.pop 80.0
      %v200 = vmul.f32 %v195, %v199
      %v201 = vmul.f32 %v198, %v199
      %v202 = vsub.f32 %v190, %v200
      %v203 = vsub.f32 %v191, %v201
      %v204 = vmul.f32 %v202, %v202
      %v205 = vmul.f32 %v203, %v203
      %v206 = vsel %vm192, %v204, 0.0
      %207 = vadd.xlane.f32.xlu0 %v206
      %v208 = vpop.xlane.xlu0 %207
      %v209 = vsel %vm192, %v205, 0.0
      %210 = vadd.xlane.f32.xlu0 %v209
      %v211 = vpop.xlane.xlu0 %210
      %v212 = vmul.f32 %v208, %v199
      %v213 = vmul.f32 %v211, %v199
      %v214 = vadd.f32 %v212, 1e-05
      %v215 = vadd.f32 %v213, 1e-05
      %v216 = vrsqrt.pop %v214
      %v217 = vrsqrt.pop %v215
      %v218 = vmul.f32 %v202, %v216
      %v219 = vmul.f32 %v203, %v217
      %v220 = vld [vmem:[%s1] sm:$0xff]
      %v221 = vld [vmem:[%s1 + $0x8] sm:$0xff]
      %v222 = vld [vmem:[%s1 + $0x10] sm:$0xff]
      %v223 = vld [vmem:[%s1 + $0x18] sm:$0xff]
      %v224 = vld [vmem:[%s1 + $0x20] sm:$0xff]
      %v225 = vld [vmem:[%s1 + $0x28] sm:$0xff]
      %v226 = vld [vmem:[%s1 + $0x30] sm:$0xff]
      %v227 = vld [vmem:[%s1 + $0x38] sm:$0xff]
      %v228 = vld [vmem:[%s1 + $0x40] sm:$0xff]
      %v229 = vld [vmem:[%s1 + $0x48] sm:$0xff]
      %v230 = vld [vmem:[%s2] sm:$0x1]
      %v232 = vlaneseq
      %v233 = vshrl.u32 %v232, 7
      %v234 = vsub.s32 0, %v233
      %v235 = vrot.slane %v230, %v234
      %v238 = vsel %vm192, %v218, 0
      %v241 = vsel %vm192, %v219, 0
      %243 = vmatprep.subr.mxu0 0.0
      %244 = vmatpush1.msra.mxu0 %v220
      %245 = vmatprep.subr.mxu0 0.0
      %246 = vmatpush1.msra.mxu0 %v221
      %247 = vmatprep.subr.mxu0 0.0
      %248 = vmatpush1.msra.mxu0 %v222
      %249 = vmatprep.subr.mxu0 0.0
      %250 = vmatpush1.msra.mxu0 %v223
      %251 = vmatprep.subr.mxu0 0.0
      %252 = vmatpush1.msra.mxu0 %v224
      %253 = vmatprep.subr.mxu0 0.0
      %254 = vmatpush1.msra.mxu0 %v225
      %255 = vmatprep.subr.mxu0 0.0
      %256 = vmatpush1.msra.mxu0 %v226
      %257 = vmatprep.subr.mxu0 0.0
      %258 = vmatpush1.msra.mxu0 %v227
      %259 = vmatprep.subr.mxu0 0.0
      %260 = vmatpush1.msra.mxu0 %v228
      %261 = vmatprep.subr.mxu0 0.0
      %262 = vmatpush1.msra.mxu0 %v229
      %263 = vmatprep.subr.mxu0 0.0
      %264 = vmatpush1.msra.mxu0 0.0
      %265 = vmatprep.subr.mxu0 0.0
      %266 = vmatpush1.msra.mxu0 0.0
      %267 = vmatprep.subr.mxu0 0.0
      %268 = vmatpush1.msra.mxu0 0.0
      %269 = vmatprep.subr.mxu0 0.0
      %270 = vmatpush1.msra.mxu0 0.0
      %271 = vmatprep.subr.mxu0 0.0
      %272 = vmatpush1.msra.mxu0 0.0
      %273 = vmatprep.subr.mxu0 0.0
      %274 = vmatpush1.msra.mxu0 0.0
      %275 = vmatprep.subr.mxu0 0.0
      %276 = vmatpush1.msra.mxu0 0.0
      %277 = vmatprep.subr.mxu0 0.0
      %278 = vmatpush1.msra.mxu0 0.0
      %279 = vmatprep.subr.mxu0 0.0
      %280 = vmatpush1.msra.mxu0 0.0
      %281 = vmatprep.subr.mxu0 0.0
      %282 = vmatpush1.msra.mxu0 0.0
      %283 = vmatprep.subr.mxu0 0.0
      %284 = vmatpush1.msra.mxu0 0.0
      %285 = vmatprep.subr.mxu0 0.0
      %286 = vmatpush1.msra.mxu0 0.0
      %287 = vmatprep.subr.mxu0 0.0
      %288 = vmatpush1.msra.mxu0 0.0
      %289 = vmatprep.subr.mxu0 0.0
      %290 = vmatpush1.msra.mxu0 0.0
      %291 = vmatprep.subr.mxu0 0.0
      %292 = vmatpush1.msra.mxu0 0.0
      %293 = vmatprep.subr.mxu0 0.0
      %294 = vmatpush1.msra.mxu0 0.0
      %295 = vmatprep.subr.mxu0 0.0
      %296 = vmatpush1.msra.mxu0 0.0
      %297 = vmatprep.subr.mxu0 0.0
      %298 = vmatpush1.msra.mxu0 0.0
      %299 = vmatprep.subr.mxu0 0.0
      %300 = vmatpush1.msra.mxu0 0.0
      %301 = vmatprep.subr.mxu0 0.0
      %302 = vmatpush1.msra.mxu0 0.0
      %303 = vmatprep.subr.mxu0 0.0
      %304 = vmatpush1.msra.mxu0 0.0
      %305 = vmatprep.subr.mxu0 0.0
      %306 = vmatpush1.msra.mxu0 0.0
      %307 = vmatprep.mubr.f32.mxu0 0.0
      %308 = vmatmul.mubr.f32.gmra.mrb[0].mxu0 %v238
      %v309 = vpop.f32.mrb[0].mxu0
      %v310 = vadd.f32 %v235, %v309
      %v311 = vpop.f32.mrb[0].mxu0
      %312 = vmatprep.mubr.f32.mxu0 0.0
      %313 = vmatmul.mubr.f32.gmra.mrb[0].mxu0 %v241
      %v314 = vpop.f32.mrb[0].mxu0
      %v315 = vadd.f32 %v235, %v314
      %v316 = vpop.f32.mrb[0].mxu0
      %317 = vdwg.mxu0
      %vm318 = vcmask 261120
      %319 = vst.msk [vmem:[%s175] sm:$0xff] %vm318, %v310
      %320 = vst.msk [vmem:[%s175 + $0x8] sm:$0xff] %vm318, %v315
      %s321 = smul.u32 2, %s14
      %p322 = scmp.lt.s32.totalorder %s321, 15
      %s323 = scalar_select %p322, %s321, 15
      %s324 = smul.addr %s323, 8
      %s325 = scalar_lea.vmem %s3, %s324
      // Predicated region
      $region33: #{shifted_patch_tokenization.1} parent=31 // pred_check
        %p326 = pneg %p100
      $region34: #{shifted_patch_tokenization.1} parent=31 // pred_check_branch
        %328 = sbr.rel (%p326) target = $region36
      $region35: #{shifted_patch_tokenization.1} parent=31 // pred_region
        %s329 = smul.u32 2, %s14
      $region36: #{shifted_patch_tokenization.1} parent=31 // pred_fallthru
        _
    $region32: #{shifted_patch_tokenization.1} parent=5 // pred_fallthru
      _
    %p330 = scmp.le.s32.totalorder 2, %s9
    // Predicated region
    $region37: #{shifted_patch_tokenization.1} parent=5 // pred_check
      %p331 = pneg %p330
    $region38: #{shifted_patch_tokenization.1} parent=5 // pred_check_branch
      %333 = sbr.rel (%p331) target = $region40
    $region39: #{shifted_patch_tokenization.1} parent=5 // pred_region
      %s334 = ssub.s32 %s9, 2
      // Predicated region
      $region41: #{shifted_patch_tokenization.1} parent=39 // pred_check
        %p335 = pneg %p106
      $region42: #{shifted_patch_tokenization.1} parent=39 // pred_check_branch
        %337 = sbr.rel (%p335) target = $region44
      $region43: #{shifted_patch_tokenization.1} parent=39 // pred_region
        %s338 = smul.u32 2, %s15
        %p339 = scmp.lt.s32.totalorder %s338, 15
        %s340 = scalar_select %p339, %s338, 15
        %s341 = smul.addr %s340, 8
        %s342 = scalar_lea.vmem %s3, %s341
      $region44: #{shifted_patch_tokenization.1} parent=39 // pred_fallthru
        _
    $region40: #{shifted_patch_tokenization.1} parent=5 // pred_fallthru
      _
  $region6: #{shifted_patch_tokenization.1} parent=0 // loop_footer
    %s13 = sadd.s32 1, %s9
  $region7: #{shifted_patch_tokenization.1} parent=0 // loop_footer_branch
    %8 = sbr.rel target = $region3
  $region8: #{shifted_patch_tokenization.1} parent=0 // loop_exit
    _

</llo_original>
